<compile_context>
chip_gen: v7x
topology: tpu7x:2x2x1
jax: 0.10.0
libtpu: 0.0.40
codegen_flags: <defaults>
</compile_context>

<pallas_src>
import functools

import numpy as np
import jax
import jax.numpy as jnp
from jax import lax
from jax.experimental import pallas as pl
from jax.experimental.pallas import tpu as pltpu

_EPS = 1e-12       # F.normalize eps:  v / max(||v||, eps)
_NEG = -1e30       # logit value for padded out_dim columns (never in support)


def _round_up(x, m):
    return (x + m - 1) // m * m


def _sparsemax_rows(z, out_dim, n_bisect, n_newton):
    """Row-wise sparsemax of an f32 (rows, Dp) tile via threshold solve.

    tau* solves sum_j max(z_j - tau, 0) = 1 and lies in [z_max - 1, z_max).
    Bisection keeps f(lo) >= 0; a couple of Newton steps
    (tau <- (sum_{z>tau} z - 1)/count) then make tau exact.
    """
    Dp = z.shape[-1]
    if out_dim < Dp:  # static: keep lane-padding out of the support set
        col = lax.broadcasted_iota(jnp.int32, z.shape, 1)
        z = jnp.where(col < out_dim, z, _NEG)

    z_max = jnp.max(z, axis=-1, keepdims=True)
    lo = z_max - 1.0
    hi = z_max

    def bisect(_, carry):
        lo, hi = carry
        mid = 0.5 * (lo + hi)
        f = jnp.sum(jnp.maximum(z - mid, 0.0), axis=-1, keepdims=True) - 1.0
        below = f >= 0.0
        return jnp.where(below, mid, lo), jnp.where(below, hi, mid)

    lo, _ = lax.fori_loop(0, n_bisect, bisect, (lo, hi), unroll=True)

    def newton(_, tau):
        act = z > tau
        k = jnp.sum(act.astype(jnp.float32), axis=-1, keepdims=True)
        s = jnp.sum(jnp.where(act, z, 0.0), axis=-1, keepdims=True)
        return (s - 1.0) / jnp.maximum(k, 1.0)

    tau = lax.fori_loop(0, n_newton, newton, lo, unroll=True)
    return jnp.maximum(z - tau, 0.0)


def _slp_single_k_kernel(x_ref, w_ref, o_ref, *, out_dim, n_bisect, n_newton):
    """Resident-weight path: grid = (batch tiles,), whole K in one tile."""
    x = x_ref[...]
    acc = lax.dot_general(x, w_ref[...], (((1,), (0,)), ((), ())),
                          preferred_element_type=jnp.float32)
    xf = x.astype(jnp.float32)
    ss = jnp.sum(xf * xf, axis=-1, keepdims=True)
    inv_norm = lax.rsqrt(jnp.maximum(ss, _EPS * _EPS))       # EUP slot
    z = acc * inv_norm
    o_ref[...] = _sparsemax_rows(z, out_dim, n_bisect, n_newton).astype(
        o_ref.dtype)


def _slp_ktiled_kernel(x_ref, w_ref, o_ref, acc_ref, ss_ref, *,
                       out_dim, n_bisect, n_newton):
    """K-tiled fallback: grid = (batch tiles, K tiles), f32 accumulator."""
    kk = pl.program_id(1)

    @pl.when(kk == 0)
    def _init():
        acc_ref[...] = jnp.zeros_like(acc_ref)
        ss_ref[...] = jnp.zeros_like(ss_ref)

    x = x_ref[...]
    acc_ref[...] += lax.dot_general(x, w_ref[...], (((1,), (0,)), ((), ())),
                                    preferred_element_type=jnp.float32)
    xf = x.astype(jnp.float32)
    ss_ref[...] += jnp.sum(xf * xf, axis=-1, keepdims=True)

    @pl.when(kk == pl.num_programs(1) - 1)
    def _finalize():
        inv_norm = lax.rsqrt(jnp.maximum(ss_ref[...], _EPS * _EPS))
        z = acc_ref[...] * inv_norm
        o_ref[...] = _sparsemax_rows(z, out_dim, n_bisect, n_newton).astype(
            o_ref.dtype)


@functools.partial(jax.jit, static_argnames=("block_b", "block_k"))
def simple_latent_proto(x, weight, lambd, block_b=256, block_k=512):
    """Pallas forward for SimpleLatentProto (default constructor flags)."""
    # TODO(synk): kds_encoder / solu_mode / kds_mode variants are not
    # implemented (this covers the default constructor flags only).
    flat = x.ndim == 3
    if flat:
        bz, seq, in_dim = x.shape
        x2 = x.reshape(bz * seq, in_dim)
    else:
        x2 = x
    B, in_dim = x2.shape
    out_dim = weight.shape[0]
    out_dtype = x.dtype

    # MXU input dtype follows the caller (bf16 stays bf16); accumulate in f32.
    if x2.dtype == jnp.bfloat16 or x2.dtype == jnp.float32:
        cdt = x2.dtype
    else:
        cdt = jnp.float32
    bc = np.dtype(cdt).itemsize
    bo = np.dtype(out_dtype).itemsize

    # ---- one-shot weight normalisation + lambda folding, (K, N) layout ----
    w32 = weight.astype(jnp.float32)
    wn = w32 * lax.rsqrt(jnp.maximum(jnp.sum(w32 * w32, axis=-1, keepdims=True),
                                     _EPS * _EPS))
    lam = jnp.asarray(lambd, jnp.float32).reshape(-1)
    if lam.shape[0] == 1:
        w_scaled = wn * lam[0]
    else:                                   # neuron-wise lambda
        w_scaled = wn * lam[:, None]
    w_t = w_scaled.T.astype(cdt)            # (in_dim, out_dim), MXU RHS layout

    Dp = _round_up(out_dim, 128)
    in_p = _round_up(in_dim, 128)

    # ---- batch tile: >=2 "parallel" tiles when batch allows (v7x megacore) --
    B8 = _round_up(max(B, 1), 8)
    if B8 >= 2 * block_b:
        blk = block_b
    elif B8 > 8:
        blk = min(block_b, _round_up(-(-B8 // 2), 8))
    else:
        blk = 8

    n_bisect, n_newton = 12, 2
    fin_tmp = 2 * blk * Dp * 4              # z + one fused temp in finalize

    # Resident-weight estimate (conservative: assume double-buffered weight).
    need_a = (2 * blk * in_p * bc + 2 * in_p * Dp * bc
              + 2 * blk * Dp * bo + fin_tmp + blk * 512)
    use_single_k = need_a <= 40 * 1024 * 1024

    if use_single_k:
        # ---- variant A: resident weight, no K grid axis, no scratch RMW ----
        Kp = in_p
        Bp = _round_up(B, blk)
        need = need_a
        vmem_limit = int(min(max(int(need * 1.25) + (2 << 20), 24 << 20),
                             48 << 20))

        x_c = x2.astype(cdt) if x2.dtype != cdt else x2
        pb, pk = Bp - B, Kp - in_dim
        x_p = jnp.pad(x_c, ((0, pb), (0, pk))) if (pb or pk) else x_c
        pko, pd = Kp - in_dim, Dp - out_dim
        w_p = jnp.pad(w_t, ((0, pko), (0, pd))) if (pko or pd) else w_t

        kernel = functools.partial(_slp_single_k_kernel, out_dim=out_dim,
                                   n_bisect=n_bisect, n_newton=n_newton)
        out = pl.pallas_call(
            kernel,
            out_shape=jax.ShapeDtypeStruct((Bp, Dp), out_dtype),
            grid_spec=pltpu.PrefetchScalarGridSpec(
                num_scalar_prefetch=0,
                grid=(Bp // blk,),
                in_specs=[
                    pl.BlockSpec((blk, Kp), lambda i: (i, 0)),   # x tile
                    pl.BlockSpec((Kp, Dp), lambda i: (0, 0)),    # resident W^T
                ],
                out_specs=pl.BlockSpec((blk, Dp), lambda i: (i, 0)),
            ),
            compiler_params=pltpu.CompilerParams(
                dimension_semantics=("parallel",),
                vmem_limit_bytes=vmem_limit,
            ),
        )(x_p, w_p)
    else:
        # ---- variant B: K-tiled, Dp-aware tk, f32 accumulator scratch ------
        tk = _round_up(min(block_k, in_p), 128)
        while tk > 128 and 2 * tk * Dp * bc > 24 * 1024 * 1024:
            tk -= 128

        def _need_b(blk_):
            return (2 * blk_ * tk * bc + 2 * tk * Dp * bc
                    + 2 * blk_ * Dp * bo + blk_ * Dp * 4
                    + 2 * blk_ * Dp * 4 + blk_ * 512)

        while blk > 8 and _need_b(blk) > 48 * 1024 * 1024:
            blk = _round_up(blk // 2, 8)

        Kp = _round_up(in_dim, tk)
        Bp = _round_up(B, blk)
        need = _need_b(blk)
        vmem_limit = int(min(max(int(need * 1.25) + (2 << 20), 24 << 20),
                             48 << 20))

        x_c = x2.astype(cdt) if x2.dtype != cdt else x2
        pb, pk = Bp - B, Kp - in_dim
        x_p = jnp.pad(x_c, ((0, pb), (0, pk))) if (pb or pk) else x_c
        pko, pd = Kp - in_dim, Dp - out_dim
        w_p = jnp.pad(w_t, ((0, pko), (0, pd))) if (pko or pd) else w_t

        kernel = functools.partial(_slp_ktiled_kernel, out_dim=out_dim,
                                   n_bisect=n_bisect, n_newton=n_newton)
        out = pl.pallas_call(
            kernel,
            out_shape=jax.ShapeDtypeStruct((Bp, Dp), out_dtype),
            grid_spec=pltpu.PrefetchScalarGridSpec(
                num_scalar_prefetch=0,
                grid=(Bp // blk, Kp // tk),
                in_specs=[
                    pl.BlockSpec((blk, tk), lambda i, k: (i, k)),   # x
                    pl.BlockSpec((tk, Dp), lambda i, k: (k, 0)),    # W^T slab
                ],
                out_specs=pl.BlockSpec((blk, Dp), lambda i, k: (i, 0)),
                scratch_shapes=[
                    pltpu.VMEM((blk, Dp), jnp.float32),   # matmul accumulator
                    pltpu.VMEM((blk, 1), jnp.float32),    # per-row sum(x*x)
                ],
            ),
            compiler_params=pltpu.CompilerParams(
                dimension_semantics=("parallel", "arbitrary"),
                vmem_limit_bytes=vmem_limit,
            ),
        )(x_p, w_p)

    out = out[:B, :out_dim]
    if flat:
        out = out.reshape(bz, seq, out_dim)
    return out


# ---------------- pure-JAX reference (sort-based sparsemax) ----------------
def _sparsemax_ref(z):
    D = z.shape[-1]
    zs = jnp.sort(z, axis=-1)[..., ::-1]
    rng = jnp.arange(1, D + 1, dtype=z.dtype)
    cssv = jnp.cumsum(zs, axis=-1) - 1.0
    cond = rng * zs > cssv
    k = jnp.sum(cond.astype(z.dtype), axis=-1, keepdims=True)
    tau = jnp.take_along_axis(cssv, k.astype(jnp.int32) - 1, axis=-1) / k
    return jnp.maximum(z - tau, 0.0)


def _ref_forward(x, weight, lambd):
    flat = x.ndim == 3
    if flat:
        bz = x.shape[0]
        x = x.reshape(-1, x.shape[-1])
    wn = weight / jnp.maximum(
        jnp.linalg.norm(weight, axis=-1, keepdims=True), _EPS)
    xn = x / jnp.maximum(jnp.linalg.norm(x, axis=-1, keepdims=True), _EPS)
    z = lambd * (xn @ wn.T)
    out = _sparsemax_ref(z)
    if flat:
        out = out.reshape(bz, -1, out.shape[-1])
    return out


if __name__ == "__main__":
    key = jax.random.PRNGKey(0)
    kx, kw, kl = jax.random.split(key, 3)

    bz, seq, in_dim, out_dim = 2, 8, 32, 16        # x: (2, 8, 32) -> flat (16, 32)
    x = jax.random.normal(kx, (bz, seq, in_dim), jnp.float32)

    # deterministic parameter init (matches nn.Module __init__ shapes):
    A = jax.random.normal(kw, (out_dim, in_dim), jnp.float32)
    A = A / jnp.linalg.norm(A, axis=-1, keepdims=True)            # self.weight
    lambd = jnp.square(jax.random.normal(kl, (1,), jnp.float32))  # self.lambd

    out = simple_latent_proto(x, A, lambd)
    out = jax.block_until_ready(out)

    ref = _ref_forward(x, A, lambd)
    err = float(jnp.max(jnp.abs(out - ref)))
    assert out.shape == (bz, seq, out_dim)
    assert err < 1e-5, f"max abs err {err}"
    # sparsemax rows sum to 1
    assert float(jnp.max(jnp.abs(jnp.sum(out, -1) - 1.0))) < 1e-5
    print("KERNEL_OK")
</pallas_src>

<mosaic_0001>
module attributes {stable_mosaic.version = 11 : i64} {
  func.func @_slp_single_k_kernel(%arg0: i32, %arg1: memref<8x128xf32, #tpu.memory_space<vmem>>, %arg2: memref<128x128xf32, #tpu.memory_space<vmem>>, %arg3: memref<8x128xf32, #tpu.memory_space<vmem>>) attributes {dimension_semantics = [#tpu.dimension_semantics<parallel>], iteration_bounds = array<i64: 2>, scalar_prefetch = 0 : i64, scratch_operands = 0 : i64, tpu.core_type = #tpu.core_type<tc>, window_params = [{transform_indices = @transform_0, window_bounds = array<i64: 8, 128>}, {pipeline_mode = #tpu.pipeline_mode<synchronous>, transform_indices = @transform_1, window_bounds = array<i64: 128, 128>}, {transform_indices = @transform_2, window_bounds = array<i64: 8, 128>}]} {
    %c0 = arith.constant 0 : index
    %c0_0 = arith.constant 0 : index
    %0 = vector.load %arg1[%c0, %c0_0] : memref<8x128xf32, #tpu.memory_space<vmem>>, vector<8x128xf32>
    %c0_1 = arith.constant 0 : index
    %c0_2 = arith.constant 0 : index
    %1 = vector.load %arg2[%c0_1, %c0_2] : memref<128x128xf32, #tpu.memory_space<vmem>>, vector<128x128xf32>
    %cst = arith.constant dense<0.000000e+00> : vector<8x128xf32>
    %2 = tpu.matmul %0, %1, %cst {dimension_numbers = #tpu.dot_dimension_numbers<[1], [0], [0], [1], [0, 0, 1, 1], [], []>} : vector<8x128xf32>, vector<128x128xf32>, vector<8x128xf32> -> vector<8x128xf32>
    %3 = arith.mulf %0, %0 : vector<8x128xf32>
    %cst_3 = arith.constant dense<0.000000e+00> : vector<8xf32>
    %4 = vector.multi_reduction <add>, %3, %cst_3 [1] : vector<8x128xf32> to vector<8xf32>
    %5 = vector.shape_cast %4 : vector<8xf32> to vector<8x1xf32>
    %cst_4 = arith.constant 1.000000e-24 : f32
    %6 = vector.broadcast %cst_4 : f32 to vector<8x1xf32>
    %7 = arith.maximumf %5, %6 : vector<8x1xf32>
    %8 = math.rsqrt %7 : vector<8x1xf32>
    %9 = vector.broadcast %8 : vector<8x1xf32> to vector<8x128xf32>
    %10 = arith.mulf %2, %9 : vector<8x128xf32>
    %11 = tpu.iota {dimensions = array<i32: 1>} : vector<8x128xi32>
    %c16_i32 = arith.constant 16 : i32
    %12 = vector.broadcast %c16_i32 : i32 to vector<8x128xi32>
    %13 = arith.cmpi slt, %11, %12 : vector<8x128xi32>
    %cst_5 = arith.constant -1.000000e+30 : f32
    %14 = vector.broadcast %cst_5 : f32 to vector<8x128xf32>
    %15 = arith.select %13, %10, %14 : vector<8x128xi1>, vector<8x128xf32>
    %cst_6 = arith.constant dense<0xFF800000> : vector<8xf32>
    %16 = vector.multi_reduction <maximumf>, %15, %cst_6 [1] : vector<8x128xf32> to vector<8xf32>
    %17 = vector.shape_cast %16 : vector<8xf32> to vector<8x1xf32>
    %cst_7 = arith.constant 1.000000e+00 : f32
    %18 = vector.broadcast %cst_7 : f32 to vector<8x1xf32>
    %19 = arith.subf %17, %18 : vector<8x1xf32>
    %c0_i32 = arith.constant 0 : i32
    %20 = arith.addf %19, %17 : vector<8x1xf32>
    %cst_8 = arith.constant 5.000000e-01 : f32
    %21 = vector.broadcast %cst_8 : f32 to vector<8x1xf32>
    %22 = arith.mulf %21, %20 : vector<8x1xf32>
    %23 = vector.broadcast %22 : vector<8x1xf32> to vector<8x128xf32>
    %24 = arith.subf %15, %23 : vector<8x128xf32>
    %cst_9 = arith.constant 0.000000e+00 : f32
    %25 = vector.broadcast %cst_9 : f32 to vector<8x128xf32>
    %26 = arith.maximumf %24, %25 : vector<8x128xf32>
    %cst_10 = arith.constant dense<0.000000e+00> : vector<8xf32>
    %27 = vector.multi_reduction <add>, %26, %cst_10 [1] : vector<8x128xf32> to vector<8xf32>
    %28 = vector.shape_cast %27 : vector<8xf32> to vector<8x1xf32>
    %cst_11 = arith.constant 1.000000e+00 : f32
    %29 = vector.broadcast %cst_11 : f32 to vector<8x1xf32>
    %30 = arith.subf %28, %29 : vector<8x1xf32>
    %cst_12 = arith.constant 0.000000e+00 : f32
    %31 = vector.broadcast %cst_12 : f32 to vector<8x1xf32>
    %32 = arith.cmpf oge, %30, %31 : vector<8x1xf32>
    %33 = arith.select %32, %22, %19 : vector<8x1xi1>, vector<8x1xf32>
    %34 = arith.select %32, %17, %22 : vector<8x1xi1>, vector<8x1xf32>
    %c1_i32 = arith.constant 1 : i32
    %35 = arith.addf %33, %34 : vector<8x1xf32>
    %cst_13 = arith.constant 5.000000e-01 : f32
    %36 = vector.broadcast %cst_13 : f32 to vector<8x1xf32>
    %37 = arith.mulf %36, %35 : vector<8x1xf32>
    %38 = vector.broadcast %37 : vector<8x1xf32> to vector<8x128xf32>
    %39 = arith.subf %15, %38 : vector<8x128xf32>
    %cst_14 = arith.constant 0.000000e+00 : f32
    %40 = vector.broadcast %cst_14 : f32 to vector<8x128xf32>
    %41 = arith.maximumf %39, %40 : vector<8x128xf32>
    %cst_15 = arith.constant dense<0.000000e+00> : vector<8xf32>
    %42 = vector.multi_reduction <add>, %41, %cst_15 [1] : vector<8x128xf32> to vector<8xf32>
    %43 = vector.shape_cast %42 : vector<8xf32> to vector<8x1xf32>
    %cst_16 = arith.constant 1.000000e+00 : f32
    %44 = vector.broadcast %cst_16 : f32 to vector<8x1xf32>
    %45 = arith.subf %43, %44 : vector<8x1xf32>
    %cst_17 = arith.constant 0.000000e+00 : f32
    %46 = vector.broadcast %cst_17 : f32 to vector<8x1xf32>
    %47 = arith.cmpf oge, %45, %46 : vector<8x1xf32>
    %48 = arith.select %47, %37, %33 : vector<8x1xi1>, vector<8x1xf32>
    %49 = arith.select %47, %34, %37 : vector<8x1xi1>, vector<8x1xf32>
    %c2_i32 = arith.constant 2 : i32
    %50 = arith.addf %48, %49 : vector<8x1xf32>
    %cst_18 = arith.constant 5.000000e-01 : f32
    %51 = vector.broadcast %cst_18 : f32 to vector<8x1xf32>
    %52 = arith.mulf %51, %50 : vector<8x1xf32>
    %53 = vector.broadcast %52 : vector<8x1xf32> to vector<8x128xf32>
    %54 = arith.subf %15, %53 : vector<8x128xf32>
    %cst_19 = arith.constant 0.000000e+00 : f32
    %55 = vector.broadcast %cst_19 : f32 to vector<8x128xf32>
    %56 = arith.maximumf %54, %55 : vector<8x128xf32>
    %cst_20 = arith.constant dense<0.000000e+00> : vector<8xf32>
    %57 = vector.multi_reduction <add>, %56, %cst_20 [1] : vector<8x128xf32> to vector<8xf32>
    %58 = vector.shape_cast %57 : vector<8xf32> to vector<8x1xf32>
    %cst_21 = arith.constant 1.000000e+00 : f32
    %59 = vector.broadcast %cst_21 : f32 to vector<8x1xf32>
    %60 = arith.subf %58, %59 : vector<8x1xf32>
    %cst_22 = arith.constant 0.000000e+00 : f32
    %61 = vector.broadcast %cst_22 : f32 to vector<8x1xf32>
    %62 = arith.cmpf oge, %60, %61 : vector<8x1xf32>
    %63 = arith.select %62, %52, %48 : vector<8x1xi1>, vector<8x1xf32>
    %64 = arith.select %62, %49, %52 : vector<8x1xi1>, vector<8x1xf32>
    %c3_i32 = arith.constant 3 : i32
    %65 = arith.addf %63, %64 : vector<8x1xf32>
    %cst_23 = arith.constant 5.000000e-01 : f32
    %66 = vector.broadcast %cst_23 : f32 to vector<8x1xf32>
    %67 = arith.mulf %66, %65 : vector<8x1xf32>
    %68 = vector.broadcast %67 : vector<8x1xf32> to vector<8x128xf32>
    %69 = arith.subf %15, %68 : vector<8x128xf32>
    %cst_24 = arith.constant 0.000000e+00 : f32
    %70 = vector.broadcast %cst_24 : f32 to vector<8x128xf32>
    %71 = arith.maximumf %69, %70 : vector<8x128xf32>
    %cst_25 = arith.constant dense<0.000000e+00> : vector<8xf32>
    %72 = vector.multi_reduction <add>, %71, %cst_25 [1] : vector<8x128xf32> to vector<8xf32>
    %73 = vector.shape_cast %72 : vector<8xf32> to vector<8x1xf32>
    %cst_26 = arith.constant 1.000000e+00 : f32
    %74 = vector.broadcast %cst_26 : f32 to vector<8x1xf32>
    %75 = arith.subf %73, %74 : vector<8x1xf32>
    %cst_27 = arith.constant 0.000000e+00 : f32
    %76 = vector.broadcast %cst_27 : f32 to vector<8x1xf32>
    %77 = arith.cmpf oge, %75, %76 : vector<8x1xf32>
    %78 = arith.select %77, %67, %63 : vector<8x1xi1>, vector<8x1xf32>
    %79 = arith.select %77, %64, %67 : vector<8x1xi1>, vector<8x1xf32>
    %c4_i32 = arith.constant 4 : i32
    %80 = arith.addf %78, %79 : vector<8x1xf32>
    %cst_28 = arith.constant 5.000000e-01 : f32
    %81 = vector.broadcast %cst_28 : f32 to vector<8x1xf32>
    %82 = arith.mulf %81, %80 : vector<8x1xf32>
    %83 = vector.broadcast %82 : vector<8x1xf32> to vector<8x128xf32>
    %84 = arith.subf %15, %83 : vector<8x128xf32>
    %cst_29 = arith.constant 0.000000e+00 : f32
    %85 = vector.broadcast %cst_29 : f32 to vector<8x128xf32>
    %86 = arith.maximumf %84, %85 : vector<8x128xf32>
    %cst_30 = arith.constant dense<0.000000e+00> : vector<8xf32>
    %87 = vector.multi_reduction <add>, %86, %cst_30 [1] : vector<8x128xf32> to vector<8xf32>
    %88 = vector.shape_cast %87 : vector<8xf32> to vector<8x1xf32>
    %cst_31 = arith.constant 1.000000e+00 : f32
    %89 = vector.broadcast %cst_31 : f32 to vector<8x1xf32>
    %90 = arith.subf %88, %89 : vector<8x1xf32>
    %cst_32 = arith.constant 0.000000e+00 : f32
    %91 = vector.broadcast %cst_32 : f32 to vector<8x1xf32>
    %92 = arith.cmpf oge, %90, %91 : vector<8x1xf32>
    %93 = arith.select %92, %82, %78 : vector<8x1xi1>, vector<8x1xf32>
    %94 = arith.select %92, %79, %82 : vector<8x1xi1>, vector<8x1xf32>
    %c5_i32 = arith.constant 5 : i32
    %95 = arith.addf %93, %94 : vector<8x1xf32>
    %cst_33 = arith.constant 5.000000e-01 : f32
    %96 = vector.broadcast %cst_33 : f32 to vector<8x1xf32>
    %97 = arith.mulf %96, %95 : vector<8x1xf32>
    %98 = vector.broadcast %97 : vector<8x1xf32> to vector<8x128xf32>
    %99 = arith.subf %15, %98 : vector<8x128xf32>
    %cst_34 = arith.constant 0.000000e+00 : f32
    %100 = vector.broadcast %cst_34 : f32 to vector<8x128xf32>
    %101 = arith.maximumf %99, %100 : vector<8x128xf32>
    %cst_35 = arith.constant dense<0.000000e+00> : vector<8xf32>
    %102 = vector.multi_reduction <add>, %101, %cst_35 [1] : vector<8x128xf32> to vector<8xf32>
    %103 = vector.shape_cast %102 : vector<8xf32> to vector<8x1xf32>
    %cst_36 = arith.constant 1.000000e+00 : f32
    %104 = vector.broadcast %cst_36 : f32 to vector<8x1xf32>
    %105 = arith.subf %103, %104 : vector<8x1xf32>
    %cst_37 = arith.constant 0.000000e+00 : f32
    %106 = vector.broadcast %cst_37 : f32 to vector<8x1xf32>
    %107 = arith.cmpf oge, %105, %106 : vector<8x1xf32>
    %108 = arith.select %107, %97, %93 : vector<8x1xi1>, vector<8x1xf32>
    %109 = arith.select %107, %94, %97 : vector<8x1xi1>, vector<8x1xf32>
    %c6_i32 = arith.constant 6 : i32
    %110 = arith.addf %108, %109 : vector<8x1xf32>
    %cst_38 = arith.constant 5.000000e-01 : f32
    %111 = vector.broadcast %cst_38 : f32 to vector<8x1xf32>
    %112 = arith.mulf %111, %110 : vector<8x1xf32>
    %113 = vector.broadcast %112 : vector<8x1xf32> to vector<8x128xf32>
    %114 = arith.subf %15, %113 : vector<8x128xf32>
    %cst_39 = arith.constant 0.000000e+00 : f32
    %115 = vector.broadcast %cst_39 : f32 to vector<8x128xf32>
    %116 = arith.maximumf %114, %115 : vector<8x128xf32>
    %cst_40 = arith.constant dense<0.000000e+00> : vector<8xf32>
    %117 = vector.multi_reduction <add>, %116, %cst_40 [1] : vector<8x128xf32> to vector<8xf32>
    %118 = vector.shape_cast %117 : vector<8xf32> to vector<8x1xf32>
    %cst_41 = arith.constant 1.000000e+00 : f32
    %119 = vector.broadcast %cst_41 : f32 to vector<8x1xf32>
    %120 = arith.subf %118, %119 : vector<8x1xf32>
    %cst_42 = arith.constant 0.000000e+00 : f32
    %121 = vector.broadcast %cst_42 : f32 to vector<8x1xf32>
    %122 = arith.cmpf oge, %120, %121 : vector<8x1xf32>
    %123 = arith.select %122, %112, %108 : vector<8x1xi1>, vector<8x1xf32>
    %124 = arith.select %122, %109, %112 : vector<8x1xi1>, vector<8x1xf32>
    %c7_i32 = arith.constant 7 : i32
    %125 = arith.addf %123, %124 : vector<8x1xf32>
    %cst_43 = arith.constant 5.000000e-01 : f32
    %126 = vector.broadcast %cst_43 : f32 to vector<8x1xf32>
    %127 = arith.mulf %126, %125 : vector<8x1xf32>
    %128 = vector.broadcast %127 : vector<8x1xf32> to vector<8x128xf32>
    %129 = arith.subf %15, %128 : vector<8x128xf32>
    %cst_44 = arith.constant 0.000000e+00 : f32
    %130 = vector.broadcast %cst_44 : f32 to vector<8x128xf32>
    %131 = arith.maximumf %129, %130 : vector<8x128xf32>
    %cst_45 = arith.constant dense<0.000000e+00> : vector<8xf32>
    %132 = vector.multi_reduction <add>, %131, %cst_45 [1] : vector<8x128xf32> to vector<8xf32>
    %133 = vector.shape_cast %132 : vector<8xf32> to vector<8x1xf32>
    %cst_46 = arith.constant 1.000000e+00 : f32
    %134 = vector.broadcast %cst_46 : f32 to vector<8x1xf32>
    %135 = arith.subf %133, %134 : vector<8x1xf32>
    %cst_47 = arith.constant 0.000000e+00 : f32
    %136 = vector.broadcast %cst_47 : f32 to vector<8x1xf32>
    %137 = arith.cmpf oge, %135, %136 : vector<8x1xf32>
    %138 = arith.select %137, %127, %123 : vector<8x1xi1>, vector<8x1xf32>
    %139 = arith.select %137, %124, %127 : vector<8x1xi1>, vector<8x1xf32>
    %c8_i32 = arith.constant 8 : i32
    %140 = arith.addf %138, %139 : vector<8x1xf32>
    %cst_48 = arith.constant 5.000000e-01 : f32
    %141 = vector.broadcast %cst_48 : f32 to vector<8x1xf32>
    %142 = arith.mulf %141, %140 : vector<8x1xf32>
    %143 = vector.broadcast %142 : vector<8x1xf32> to vector<8x128xf32>
    %144 = arith.subf %15, %143 : vector<8x128xf32>
    %cst_49 = arith.constant 0.000000e+00 : f32
    %145 = vector.broadcast %cst_49 : f32 to vector<8x128xf32>
    %146 = arith.maximumf %144, %145 : vector<8x128xf32>
    %cst_50 = arith.constant dense<0.000000e+00> : vector<8xf32>
    %147 = vector.multi_reduction <add>, %146, %cst_50 [1] : vector<8x128xf32> to vector<8xf32>
    %148 = vector.shape_cast %147 : vector<8xf32> to vector<8x1xf32>
    %cst_51 = arith.constant 1.000000e+00 : f32
    %149 = vector.broadcast %cst_51 : f32 to vector<8x1xf32>
    %150 = arith.subf %148, %149 : vector<8x1xf32>
    %cst_52 = arith.constant 0.000000e+00 : f32
    %151 = vector.broadcast %cst_52 : f32 to vector<8x1xf32>
    %152 = arith.cmpf oge, %150, %151 : vector<8x1xf32>
    %153 = arith.select %152, %142, %138 : vector<8x1xi1>, vector<8x1xf32>
    %154 = arith.select %152, %139, %142 : vector<8x1xi1>, vector<8x1xf32>
    %c9_i32 = arith.constant 9 : i32
    %155 = arith.addf %153, %154 : vector<8x1xf32>
    %cst_53 = arith.constant 5.000000e-01 : f32
    %156 = vector.broadcast %cst_53 : f32 to vector<8x1xf32>
    %157 = arith.mulf %156, %155 : vector<8x1xf32>
    %158 = vector.broadcast %157 : vector<8x1xf32> to vector<8x128xf32>
    %159 = arith.subf %15, %158 : vector<8x128xf32>
    %cst_54 = arith.constant 0.000000e+00 : f32
    %160 = vector.broadcast %cst_54 : f32 to vector<8x128xf32>
    %161 = arith.maximumf %159, %160 : vector<8x128xf32>
    %cst_55 = arith.constant dense<0.000000e+00> : vector<8xf32>
    %162 = vector.multi_reduction <add>, %161, %cst_55 [1] : vector<8x128xf32> to vector<8xf32>
    %163 = vector.shape_cast %162 : vector<8xf32> to vector<8x1xf32>
    %cst_56 = arith.constant 1.000000e+00 : f32
    %164 = vector.broadcast %cst_56 : f32 to vector<8x1xf32>
    %165 = arith.subf %163, %164 : vector<8x1xf32>
    %cst_57 = arith.constant 0.000000e+00 : f32
    %166 = vector.broadcast %cst_57 : f32 to vector<8x1xf32>
    %167 = arith.cmpf oge, %165, %166 : vector<8x1xf32>
    %168 = arith.select %167, %157, %153 : vector<8x1xi1>, vector<8x1xf32>
    %169 = arith.select %167, %154, %157 : vector<8x1xi1>, vector<8x1xf32>
    %c10_i32 = arith.constant 10 : i32
    %170 = arith.addf %168, %169 : vector<8x1xf32>
    %cst_58 = arith.constant 5.000000e-01 : f32
    %171 = vector.broadcast %cst_58 : f32 to vector<8x1xf32>
    %172 = arith.mulf %171, %170 : vector<8x1xf32>
    %173 = vector.broadcast %172 : vector<8x1xf32> to vector<8x128xf32>
    %174 = arith.subf %15, %173 : vector<8x128xf32>
    %cst_59 = arith.constant 0.000000e+00 : f32
    %175 = vector.broadcast %cst_59 : f32 to vector<8x128xf32>
    %176 = arith.maximumf %174, %175 : vector<8x128xf32>
    %cst_60 = arith.constant dense<0.000000e+00> : vector<8xf32>
    %177 = vector.multi_reduction <add>, %176, %cst_60 [1] : vector<8x128xf32> to vector<8xf32>
    %178 = vector.shape_cast %177 : vector<8xf32> to vector<8x1xf32>
    %cst_61 = arith.constant 1.000000e+00 : f32
    %179 = vector.broadcast %cst_61 : f32 to vector<8x1xf32>
    %180 = arith.subf %178, %179 : vector<8x1xf32>
    %cst_62 = arith.constant 0.000000e+00 : f32
    %181 = vector.broadcast %cst_62 : f32 to vector<8x1xf32>
    %182 = arith.cmpf oge, %180, %181 : vector<8x1xf32>
    %183 = arith.select %182, %172, %168 : vector<8x1xi1>, vector<8x1xf32>
    %184 = arith.select %182, %169, %172 : vector<8x1xi1>, vector<8x1xf32>
    %c11_i32 = arith.constant 11 : i32
    %185 = arith.addf %183, %184 : vector<8x1xf32>
    %cst_63 = arith.constant 5.000000e-01 : f32
    %186 = vector.broadcast %cst_63 : f32 to vector<8x1xf32>
    %187 = arith.mulf %186, %185 : vector<8x1xf32>
    %188 = vector.broadcast %187 : vector<8x1xf32> to vector<8x128xf32>
    %189 = arith.subf %15, %188 : vector<8x128xf32>
    %cst_64 = arith.constant 0.000000e+00 : f32
    %190 = vector.broadcast %cst_64 : f32 to vector<8x128xf32>
    %191 = arith.maximumf %189, %190 : vector<8x128xf32>
    %cst_65 = arith.constant dense<0.000000e+00> : vector<8xf32>
    %192 = vector.multi_reduction <add>, %191, %cst_65 [1] : vector<8x128xf32> to vector<8xf32>
    %193 = vector.shape_cast %192 : vector<8xf32> to vector<8x1xf32>
    %cst_66 = arith.constant 1.000000e+00 : f32
    %194 = vector.broadcast %cst_66 : f32 to vector<8x1xf32>
    %195 = arith.subf %193, %194 : vector<8x1xf32>
    %cst_67 = arith.constant 0.000000e+00 : f32
    %196 = vector.broadcast %cst_67 : f32 to vector<8x1xf32>
    %197 = arith.cmpf oge, %195, %196 : vector<8x1xf32>
    %198 = arith.select %197, %187, %183 : vector<8x1xi1>, vector<8x1xf32>
    %199 = arith.select %197, %184, %187 : vector<8x1xi1>, vector<8x1xf32>
    %c0_i32_68 = arith.constant 0 : i32
    %200 = vector.broadcast %198 : vector<8x1xf32> to vector<8x128xf32>
    %201 = arith.cmpf ogt, %15, %200 : vector<8x128xf32>
    %202 = arith.extui %201 : vector<8x128xi1> to vector<8x128xi32>
    %203 = arith.sitofp %202 : vector<8x128xi32> to vector<8x128xf32>
    %cst_69 = arith.constant dense<0.000000e+00> : vector<8xf32>
    %204 = vector.multi_reduction <add>, %203, %cst_69 [1] : vector<8x128xf32> to vector<8xf32>
    %205 = vector.shape_cast %204 : vector<8xf32> to vector<8x1xf32>
    %cst_70 = arith.constant 0.000000e+00 : f32
    %206 = vector.broadcast %cst_70 : f32 to vector<8x128xf32>
    %207 = arith.select %201, %15, %206 : vector<8x128xi1>, vector<8x128xf32>
    %cst_71 = arith.constant dense<0.000000e+00> : vector<8xf32>
    %208 = vector.multi_reduction <add>, %207, %cst_71 [1] : vector<8x128xf32> to vector<8xf32>
    %209 = vector.shape_cast %208 : vector<8xf32> to vector<8x1xf32>
    %cst_72 = arith.constant 1.000000e+00 : f32
    %210 = vector.broadcast %cst_72 : f32 to vector<8x1xf32>
    %211 = arith.subf %209, %210 : vector<8x1xf32>
    %cst_73 = arith.constant 1.000000e+00 : f32
    %212 = vector.broadcast %cst_73 : f32 to vector<8x1xf32>
    %213 = arith.maximumf %205, %212 : vector<8x1xf32>
    %214 = arith.divf %211, %213 : vector<8x1xf32>
    %c1_i32_74 = arith.constant 1 : i32
    %215 = vector.broadcast %214 : vector<8x1xf32> to vector<8x128xf32>
    %216 = arith.cmpf ogt, %15, %215 : vector<8x128xf32>
    %217 = arith.extui %216 : vector<8x128xi1> to vector<8x128xi32>
    %218 = arith.sitofp %217 : vector<8x128xi32> to vector<8x128xf32>
    %cst_75 = arith.constant dense<0.000000e+00> : vector<8xf32>
    %219 = vector.multi_reduction <add>, %218, %cst_75 [1] : vector<8x128xf32> to vector<8xf32>
    %220 = vector.shape_cast %219 : vector<8xf32> to vector<8x1xf32>
    %cst_76 = arith.constant 0.000000e+00 : f32
    %221 = vector.broadcast %cst_76 : f32 to vector<8x128xf32>
    %222 = arith.select %216, %15, %221 : vector<8x128xi1>, vector<8x128xf32>
    %cst_77 = arith.constant dense<0.000000e+00> : vector<8xf32>
    %223 = vector.multi_reduction <add>, %222, %cst_77 [1] : vector<8x128xf32> to vector<8xf32>
    %224 = vector.shape_cast %223 : vector<8xf32> to vector<8x1xf32>
    %cst_78 = arith.constant 1.000000e+00 : f32
    %225 = vector.broadcast %cst_78 : f32 to vector<8x1xf32>
    %226 = arith.subf %224, %225 : vector<8x1xf32>
    %cst_79 = arith.constant 1.000000e+00 : f32
    %227 = vector.broadcast %cst_79 : f32 to vector<8x1xf32>
    %228 = arith.maximumf %220, %227 : vector<8x1xf32>
    %229 = arith.divf %226, %228 : vector<8x1xf32>
    %230 = vector.broadcast %229 : vector<8x1xf32> to vector<8x128xf32>
    %231 = arith.subf %15, %230 : vector<8x128xf32>
    %cst_80 = arith.constant 0.000000e+00 : f32
    %232 = vector.broadcast %cst_80 : f32 to vector<8x128xf32>
    %233 = arith.maximumf %231, %232 : vector<8x128xf32>
    %c0_81 = arith.constant 0 : index
    %c0_82 = arith.constant 0 : index
    %234 = vector.load %arg3[%c0_81, %c0_82] : memref<8x128xf32, #tpu.memory_space<vmem>>, vector<8x128xf32>
    tpu.vector_store %arg3[%c0_81, %c0_82], %233 {strides = array<i32>} : memref<8x128xf32, #tpu.memory_space<vmem>>, vector<8x128xf32>,
    return
  }
  func.func @transform_0(%arg0: i32) -> (i32, i32) {
    %c0_i32 = arith.constant 0 : i32
    %c0_i32_0 = arith.constant 0 : i32
    return %arg0, %c0_i32 : i32, i32
  }
  func.func @transform_1(%arg0: i32) -> (i32, i32) {
    %c0_i32 = arith.constant 0 : i32
    %c0_i32_0 = arith.constant 0 : i32
    %c0_i32_1 = arith.constant 0 : i32
    return %c0_i32, %c0_i32_0 : i32, i32
  }
  func.func @transform_2(%arg0: i32) -> (i32, i32) {
    %c0_i32 = arith.constant 0 : i32
    %c0_i32_0 = arith.constant 0 : i32
    return %arg0, %c0_i32 : i32, i32
  }
}

</mosaic_0001>

<llo_original>
// kernel: simple_latent_proto.1
$region0: #{simple_latent_proto.1}
  #allocation0 [shape = 'u32[]', space=smem, size = 0x4, offset = 0x4, fixed_abs, tag = 'smem constant byte address 0x4 - core index']
  #allocation1 [shape = 'u32[144,128]{1,0:T(1,128)}', space=vmem, size = 0x12000, scoped, tag = 'internal scratch']
  %s0 = inlined_call_operand.vmem [shape: f32[16,128], index: 0, kind: input, shape index: {}]
  %s1 = inlined_call_operand.vmem [shape: f32[128,128], index: 1, kind: input, shape index: {}]
  %s2 = inlined_call_operand.vmem [shape: f32[16,128], index: 2, kind: output, shape index: {}]
  %s3 = sld [smem:[#allocation0]]
  $region41: #{simple_latent_proto.1} parent=0
    _
  %s5 = ssub.s32 1, %s3
  %s6 = scalar_select 0, %s5, %s3
  loop: start=0, step=1, limit=4
  $region2: #{simple_latent_proto.1} parent=0 // loop_pre_header
    _
  $region3: #{simple_latent_proto.1} parent=0 // loop_header
    %s8 = sphi 0, %s12
    %p9 = scmp.ge.s32.totalorder %s8, 4
    %s18 = sphi 0, %s20
    %s21 = sphi 0, %s18
    %s22 = sphi 0, %s21
    %s38 = sphi 0, %s22
    %s42 = sphi 0, %s42
    %s44 = sphi 0, %s42
    %s45 = sphi 0, %s44
    %s59 = sphi 0, %s45
    %s65 = sphi 0, %s67
    %s68 = sphi 0, %s65
    %s69 = sphi 0, %s68
    %s85 = sphi 0, %s69
  $region4: #{simple_latent_proto.1} parent=0 // loop_header_branch
    %11 = sbr.rel (%p9) target = $region8
  $region5: #{simple_latent_proto.1} parent=0 // loop_body
    %s13 = ssub.s32 %s8, 1
    %s14 = ssub.s32 %s8, 2
    %s15 = sadd.s32 %s8, 1
    %s16 = ssub.s32 %s8, %s15
    %p17 = scmp.eq.s32.totalorder %s16, 0
    %s19 = sadd.s32 %s18, 1
    %s20 = scalar_select %p17, %s18, %s19
    %p23 = pneg %p17
    %p24 = scmp.eq.s32.totalorder %s8, 1
    %p25 = por %p23, %p24
    %p26 = scmp.ne.s32.totalorder %s18, %s21
    %p27 = scmp.eq.s32.totalorder %s8, 0
    %p28 = por %p26, %p27
    %p29 = scmp.ne.s32.totalorder %s18, %s21
    %p30 = scmp.eq.s32.totalorder %s13, 1
    %p31 = por %p29, %p30
    %p32 = scmp.ne.s32.totalorder %s21, %s22
    %p33 = scmp.eq.s32.totalorder %s13, 0
    %p34 = por %p32, %p33
    %p35 = scmp.ne.s32.totalorder %s21, %s22
    %p36 = scmp.eq.s32.totalorder %s14, 1
    %p37 = por %p35, %p36
    %p39 = scmp.ne.s32.totalorder %s22, %s38
    %p40 = scmp.eq.s32.totalorder %s14, 0
    %p41 = por %p39, %p40
    %s43 = sadd.s32 %s42, 1
    %p46 = scmp.eq.s32.totalorder %s8, 1
    %p47 = scmp.ne.s32.totalorder %s42, %s44
    %p48 = scmp.eq.s32.totalorder %s8, 0
    %p49 = por %p47, %p48
    %p50 = scmp.ne.s32.totalorder %s42, %s44
    %p51 = scmp.eq.s32.totalorder %s13, 1
    %p52 = por %p50, %p51
    %p53 = scmp.ne.s32.totalorder %s44, %s45
    %p54 = scmp.eq.s32.totalorder %s13, 0
    %p55 = por %p53, %p54
    %p56 = scmp.ne.s32.totalorder %s44, %s45
    %p57 = scmp.eq.s32.totalorder %s14, 1
    %p58 = por %p56, %p57
    %p60 = scmp.ne.s32.totalorder %s45, %s59
    %p61 = scmp.eq.s32.totalorder %s14, 0
    %p62 = por %p60, %p61
    %s63 = ssub.s32 %s8, %s15
    %p64 = scmp.eq.s32.totalorder %s63, 0
    %s66 = sadd.s32 %s65, 1
    %s67 = scalar_select %p64, %s65, %s66
    %p70 = pneg %p64
    %p71 = scmp.eq.s32.totalorder %s8, 1
    %p72 = por %p70, %p71
    %p73 = scmp.ne.s32.totalorder %s65, %s68
    %p74 = scmp.eq.s32.totalorder %s8, 0
    %p75 = por %p73, %p74
    %p76 = scmp.ne.s32.totalorder %s65, %s68
    %p77 = scmp.eq.s32.totalorder %s13, 1
    %p78 = por %p76, %p77
    %p79 = scmp.ne.s32.totalorder %s68, %s69
    %p80 = scmp.eq.s32.totalorder %s13, 0
    %p81 = por %p79, %p80
    %p82 = scmp.ne.s32.totalorder %s68, %s69
    %p83 = scmp.eq.s32.totalorder %s14, 1
    %p84 = por %p82, %p83
    %p86 = scmp.ne.s32.totalorder %s69, %s85
    %p87 = scmp.eq.s32.totalorder %s14, 0
    %p88 = por %p86, %p87
    %p89 = scmp.le.s32.totalorder 1, %s8
    %p90 = scmp.lt.s32.totalorder %s8, 3
    %p91 = pnand %p89, %p90
    %p92 = pneg %p91
    // Predicated region
    $region9: #{simple_latent_proto.1} parent=5 // pred_check
      _
    $region10: #{simple_latent_proto.1} parent=5 // pred_check_branch
      %94 = sbr.rel (%p91) target = $region12
    $region11: #{simple_latent_proto.1} parent=5 // pred_region
      %s95 = ssub.s32 %s8, 1
      // Predicated region
      $region13: #{simple_latent_proto.1} parent=11 // pred_check
        %p96 = pneg %p55
      $region14: #{simple_latent_proto.1} parent=11 // pred_check_branch
        %98 = sbr.rel (%p96) target = $region16
      $region15: #{simple_latent_proto.1} parent=11 // pred_region
        _
      $region16: #{simple_latent_proto.1} parent=11 // pred_fallthru
        _
    $region12: #{simple_latent_proto.1} parent=5 // pred_fallthru
      _
    %p99 = scmp.lt.s32.totalorder %s8, 2
    // Predicated region
    $region17: #{simple_latent_proto.1} parent=5 // pred_check
      %p100 = pneg %p99
    $region18: #{simple_latent_proto.1} parent=5 // pred_check_branch
      %102 = sbr.rel (%p100) target = $region20
    $region19: #{simple_latent_proto.1} parent=5 // pred_region
      // Predicated region
      $region21: #{simple_latent_proto.1} parent=19 // pred_check
        %p103 = pneg %p28
      $region22: #{simple_latent_proto.1} parent=19 // pred_check_branch
        %105 = sbr.rel (%p103) target = $region24
      $region23: #{simple_latent_proto.1} parent=19 // pred_region
        %p106 = scmp.lt.s32.totalorder %s8, 1
        %s107 = scalar_select %p106, %s8, 1
        %s108 = smul.addr %s107, 8
        %s109 = scalar_lea.vmem %s0, %s108
      $region24: #{simple_latent_proto.1} parent=19 // pred_fallthru
        _
    $region20: #{simple_latent_proto.1} parent=5 // pred_fallthru
      _
    %p110 = scmp.le.s32.totalorder 1, %s8
    %p111 = scmp.lt.s32.totalorder %s8, 3
    %p112 = pnand %p110, %p111
    %p113 = pneg %p112
    // Predicated region
    $region25: #{simple_latent_proto.1} parent=5 // pred_check
      _
    $region26: #{simple_latent_proto.1} parent=5 // pred_check_branch
      %115 = sbr.rel (%p112) target = $region28
    $region27: #{simple_latent_proto.1} parent=5 // pred_region
      %s116 = ssub.s32 %s8, 1
      %p117 = scmp.lt.s32.totalorder %s13, 1
      %s118 = scalar_select %p117, %s13, 1
      %s119 = smul.addr %s118, 8
      %s120 = scalar_lea.vmem %s0, %s119
      %p121 = pneg %p34
      %p122 = pneg %p31
      %p123 = pneg %p55
      %p124 = pneg %p52
      %p125 = pneg %p81
      %p126 = pneg %p78
      %p127 = scmp.lt.s32.totalorder %s13, 1
      %s128 = scalar_select %p127, %s13, 1
      %s129 = smul.addr %s128, 8
      %s130 = scalar_lea.vmem %s2, %s129
      %p131 = scmp.lt.s32.totalorder %s13, 1
      %s132 = scalar_select %p131, %s13, 1
      %s133 = smul.addr %s132, 8
      %s134 = scalar_lea.vmem %s0, %s133
      %p135 = scmp.lt.s32.totalorder %s13, 1
      %s136 = scalar_select %p135, %s13, 1
      %s137 = smul.addr %s136, 8
      %s138 = scalar_lea.vmem %s2, %s137
      %v139 = vld [vmem:[%s134] sm:$0xff]
      %v140 = vld [vmem:[%s1] sm:$0xff]
      %v141 = vld [vmem:[%s1 + $0x8] sm:$0xff]
      %v142 = vld [vmem:[%s1 + $0x10] sm:$0xff]
      %v143 = vld [vmem:[%s1 + $0x18] sm:$0xff]
      %v144 = vld [vmem:[%s1 + $0x20] sm:$0xff]
      %v145 = vld [vmem:[%s1 + $0x28] sm:$0xff]
      %v146 = vld [vmem:[%s1 + $0x30] sm:$0xff]
      %v147 = vld [vmem:[%s1 + $0x38] sm:$0xff]
      %v148 = vld [vmem:[%s1 + $0x40] sm:$0xff]
      %v149 = vld [vmem:[%s1 + $0x48] sm:$0xff]
      %v150 = vld [vmem:[%s1 + $0x50] sm:$0xff]
      %v151 = vld [vmem:[%s1 + $0x58] sm:$0xff]
      %v152 = vld [vmem:[%s1 + $0x60] sm:$0xff]
      %v153 = vld [vmem:[%s1 + $0x68] sm:$0xff]
      %v154 = vld [vmem:[%s1 + $0x70] sm:$0xff]
      %v155 = vld [vmem:[%s1 + $0x78] sm:$0xff]
      %156 = vmatprep.subr.mxu0 0.0
      %157 = vmatpush1.msra.mxu0 %v140
      %158 = vmatprep.subr.mxu0 0.0
      %159 = vmatpush1.msra.mxu0 %v141
      %160 = vmatprep.subr.mxu0 0.0
      %161 = vmatpush1.msra.mxu0 %v142
      %162 = vmatprep.subr.mxu0 0.0
      %163 = vmatpush1.msra.mxu0 %v143
      %164 = vmatprep.subr.mxu0 0.0
      %165 = vmatpush1.msra.mxu0 %v144
      %166 = vmatprep.subr.mxu0 0.0
      %167 = vmatpush1.msra.mxu0 %v145
      %168 = vmatprep.subr.mxu0 0.0
      %169 = vmatpush1.msra.mxu0 %v146
      %170 = vmatprep.subr.mxu0 0.0
      %171 = vmatpush1.msra.mxu0 %v147
      %172 = vmatprep.subr.mxu0 0.0
      %173 = vmatpush1.msra.mxu0 %v148
      %174 = vmatprep.subr.mxu0 0.0
      %175 = vmatpush1.msra.mxu0 %v149
      %176 = vmatprep.subr.mxu0 0.0
      %177 = vmatpush1.msra.mxu0 %v150
      %178 = vmatprep.subr.mxu0 0.0
      %179 = vmatpush1.msra.mxu0 %v151
      %180 = vmatprep.subr.mxu0 0.0
      %181 = vmatpush1.msra.mxu0 %v152
      %182 = vmatprep.subr.mxu0 0.0
      %183 = vmatpush1.msra.mxu0 %v153
      %184 = vmatprep.subr.mxu0 0.0
      %185 = vmatpush1.msra.mxu0 %v154
      %186 = vmatprep.subr.mxu0 0.0
      %187 = vmatpush1.msra.mxu0 %v155
      %188 = vmatprep.subr.mxu0 0.0
      %189 = vmatpush1.msra.mxu0 0.0
      %190 = vmatprep.subr.mxu0 0.0
      %191 = vmatpush1.msra.mxu0 0.0
      %192 = vmatprep.subr.mxu0 0.0
      %193 = vmatpush1.msra.mxu0 0.0
      %194 = vmatprep.subr.mxu0 0.0
      %195 = vmatpush1.msra.mxu0 0.0
      %196 = vmatprep.subr.mxu0 0.0
      %197 = vmatpush1.msra.mxu0 0.0
      %198 = vmatprep.subr.mxu0 0.0
      %199 = vmatpush1.msra.mxu0 0.0
      %200 = vmatprep.subr.mxu0 0.0
      %201 = vmatpush1.msra.mxu0 0.0
      %202 = vmatprep.subr.mxu0 0.0
      %203 = vmatpush1.msra.mxu0 0.0
      %204 = vmatprep.subr.mxu0 0.0
      %205 = vmatpush1.msra.mxu0 0.0
      %206 = vmatprep.subr.mxu0 0.0
      %207 = vmatpush1.msra.mxu0 0.0
      %208 = vmatprep.subr.mxu0 0.0
      %209 = vmatpush1.msra.mxu0 0.0
      %210 = vmatprep.subr.mxu0 0.0
      %211 = vmatpush1.msra.mxu0 0.0
      %212 = vmatprep.subr.mxu0 0.0
      %213 = vmatpush1.msra.mxu0 0.0
      %214 = vmatprep.subr.mxu0 0.0
      %215 = vmatpush1.msra.mxu0 0.0
      %216 = vmatprep.subr.mxu0 0.0
      %217 = vmatpush1.msra.mxu0 0.0
      %218 = vmatprep.subr.mxu0 0.0
      %219 = vmatpush1.msra.mxu0 0.0
      %220 = vmatprep.mubr.f32.mxu0 0.0
      %221 = vmatmul.mubr.f32.gmra.mrb[0].mxu0 %v139
      %v222 = vpop.f32.mrb[0].mxu0
      %v223 = vadd.f32 0.0, %v222
      %v224 = vpop.f32.mrb[0].mxu0
      %225 = vdwg.mxu0
      %v226 = vmul.f32 %v139, %v139
      %227 = vadd.xlane.f32.xlu0 %v226
      %v228 = vpop.xlane.xlu0 %227
      %v229 = vmax.f32 %v228, 1e-24
      %v230 = vrsqrt.pop %v229
      %v231 = vmul.f32 %v223, %v230
      %v232 = vlaneseq
      %v233 = vand.u32 %v232, 127
      %vm234 = vcmp.lt.s32.totalorder %v233, 16
      %v235 = vsel %vm234, %v231, -1e+30
      %236 = vmax.xlane.f32.xlu0 %v235
      %v237 = vpop.xlane.xlu0 %236
      %v238 = vsub.f32 %v237, 1.0
      %v239 = vadd.f32 %v238, %v237
      %v240 = vmul.f32 %v239, 0.5
      %v241 = vsub.f32 %v235, %v240
      %v242 = vmax.f32 %v241, 0.0
      %243 = vadd.xlane.f32.xlu0 %v242
      %v244 = vpop.xlane.xlu0 %243
      %v245 = vsub.f32 %v244, 1.0
      %vm246 = vcmp.ge.f32.partialorder %v245, 0.0
      %v247 = vsel %vm246, %v240, %v238
      %v248 = vsel %vm246, %v237, %v240
      %v249 = vadd.f32 %v247, %v248
      %v250 = vmul.f32 %v249, 0.5
      %v251 = vsub.f32 %v235, %v250
      %v252 = vmax.f32 %v251, 0.0
      %253 = vadd.xlane.f32.xlu0 %v252
      %v254 = vpop.xlane.xlu0 %253
      %v255 = vsub.f32 %v254, 1.0
      %vm256 = vcmp.ge.f32.partialorder %v255, 0.0
      %v257 = vsel %vm256, %v250, %v247
      %v258 = vsel %vm256, %v248, %v250
      %v259 = vadd.f32 %v257, %v258
      %v260 = vmul.f32 %v259, 0.5
      %v261 = vsub.f32 %v235, %v260
      %v262 = vmax.f32 %v261, 0.0
      %263 = vadd.xlane.f32.xlu0 %v262
      %v264 = vpop.xlane.xlu0 %263
      %v265 = vsub.f32 %v264, 1.0
      %vm266 = vcmp.ge.f32.partialorder %v265, 0.0
      %v267 = vsel %vm266, %v260, %v257
      %v268 = vsel %vm266, %v258, %v260
      %v269 = vadd.f32 %v267, %v268
      %v270 = vmul.f32 %v269, 0.5
      %v271 = vsub.f32 %v235, %v270
      %v272 = vmax.f32 %v271, 0.0
      %273 = vadd.xlane.f32.xlu0 %v272
      %v274 = vpop.xlane.xlu0 %273
      %v275 = vsub.f32 %v274, 1.0
      %vm276 = vcmp.ge.f32.partialorder %v275, 0.0
      %v277 = vsel %vm276, %v270, %v267
      %v278 = vsel %vm276, %v268, %v270
      %v279 = vadd.f32 %v277, %v278
      %v280 = vmul.f32 %v279, 0.5
      %v281 = vsub.f32 %v235, %v280
      %v282 = vmax.f32 %v281, 0.0
      %283 = vadd.xlane.f32.xlu0 %v282
      %v284 = vpop.xlane.xlu0 %283
      %v285 = vsub.f32 %v284, 1.0
      %vm286 = vcmp.ge.f32.partialorder %v285, 0.0
      %v287 = vsel %vm286, %v280, %v277
      %v288 = vsel %vm286, %v278, %v280
      %v289 = vadd.f32 %v287, %v288
      %v290 = vmul.f32 %v289, 0.5
      %v291 = vsub.f32 %v235, %v290
      %v292 = vmax.f32 %v291, 0.0
      %293 = vadd.xlane.f32.xlu0 %v292
      %v294 = vpop.xlane.xlu0 %293
      %v295 = vsub.f32 %v294, 1.0
      %vm296 = vcmp.ge.f32.partialorder %v295, 0.0
      %v297 = vsel %vm296, %v290, %v287
      %v298 = vsel %vm296, %v288, %v290
      %v299 = vadd.f32 %v297, %v298
      %v300 = vmul.f32 %v299, 0.5
      %v301 = vsub.f32 %v235, %v300
      %v302 = vmax.f32 %v301, 0.0
      %303 = vadd.xlane.f32.xlu0 %v302
      %v304 = vpop.xlane.xlu0 %303
      %v305 = vsub.f32 %v304, 1.0
      %vm306 = vcmp.ge.f32.partialorder %v305, 0.0
      %v307 = vsel %vm306, %v300, %v297
      %v308 = vsel %vm306, %v298, %v300
      %v309 = vadd.f32 %v307, %v308
      %v310 = vmul.f32 %v309, 0.5
      %v311 = vsub.f32 %v235, %v310
      %v312 = vmax.f32 %v311, 0.0
      %313 = vadd.xlane.f32.xlu0 %v312
      %v314 = vpop.xlane.xlu0 %313
      %v315 = vsub.f32 %v314, 1.0
      %vm316 = vcmp.ge.f32.partialorder %v315, 0.0
      %v317 = vsel %vm316, %v310, %v307
      %v318 = vsel %vm316, %v308, %v310
      %v319 = vadd.f32 %v317, %v318
      %v320 = vmul.f32 %v319, 0.5
      %v321 = vsub.f32 %v235, %v320
      %v322 = vmax.f32 %v321, 0.0
      %323 = vadd.xlane.f32.xlu0 %v322
      %v324 = vpop.xlane.xlu0 %323
      %v325 = vsub.f32 %v324, 1.0
      %vm326 = vcmp.ge.f32.partialorder %v325, 0.0
      %v327 = vsel %vm326, %v320, %v317
      %v328 = vsel %vm326, %v318, %v320
      %v329 = vadd.f32 %v327, %v328
      %v330 = vmul.f32 %v329, 0.5
      %v331 = vsub.f32 %v235, %v330
      %v332 = vmax.f32 %v331, 0.0
      %333 = vadd.xlane.f32.xlu0 %v332
      %v334 = vpop.xlane.xlu0 %333
      %v335 = vsub.f32 %v334, 1.0
      %vm336 = vcmp.ge.f32.partialorder %v335, 0.0
      %v337 = vsel %vm336, %v330, %v327
      %v338 = vsel %vm336, %v328, %v330
      %v339 = vadd.f32 %v337, %v338
      %v340 = vmul.f32 %v339, 0.5
      %v341 = vsub.f32 %v235, %v340
      %v342 = vmax.f32 %v341, 0.0
      %343 = vadd.xlane.f32.xlu0 %v342
      %v344 = vpop.xlane.xlu0 %343
      %v345 = vsub.f32 %v344, 1.0
      %vm346 = vcmp.ge.f32.partialorder %v345, 0.0
      %v347 = vsel %vm346, %v340, %v337
      %v348 = vsel %vm346, %v338, %v340
      %v349 = vadd.f32 %v347, %v348
      %v350 = vmul.f32 %v349, 0.5
      %v351 = vsub.f32 %v235, %v350
      %v352 = vmax.f32 %v351, 0.0
      %353 = vadd.xlane.f32.xlu0 %v352
      %v354 = vpop.xlane.xlu0 %353
      %v355 = vsub.f32 %v354, 1.0
      %vm356 = vcmp.ge.f32.partialorder %v355, 0.0
      %v357 = vsel %vm356, %v350, %v347
      %vm358 = vcmp.gt.f32.partialorder %v235, %v357
      %v359 = vsel %vm358, 1, 0
      %v360 = vcvt.s32.f32 %v359
      %361 = vadd.xlane.f32.xlu0 %v360
      %v362 = vpop.xlane.xlu0 %361
      %v363 = vsel %vm358, %v235, 0.0
      %364 = vadd.xlane.f32.xlu0 %v363
      %v365 = vpop.xlane.xlu0 %364
      %v366 = vsub.f32 %v365, 1.0
      %v367 = vmax.f32 %v362, 1.0
      %v368 = vrcp.pop %v367
      %v369 = vmul.f32 %v366, %v368
      %vm370 = vcmp.gt.f32.partialorder %v235, %v369
      %v371 = vsel %vm370, 1, 0
      %v372 = vcvt.s32.f32 %v371
      %373 = vadd.xlane.f32.xlu0 %v372
      %v374 = vpop.xlane.xlu0 %373
      %v375 = vsel %vm370, %v235, 0.0
      %376 = vadd.xlane.f32.xlu0 %v375
      %v377 = vpop.xlane.xlu0 %376
      %v378 = vsub.f32 %v377, 1.0
      %v379 = vmax.f32 %v374, 1.0
      %v380 = vrcp.pop %v379
      %v381 = vmul.f32 %v378, %v380
      %v382 = vsub.f32 %v235, %v381
      %v383 = vmax.f32 %v382, 0.0
      %384 = vst [vmem:[%s138] sm:$0xff] %v383
      %p385 = scmp.lt.s32.totalorder %s13, 1
      %s386 = scalar_select %p385, %s13, 1
      %s387 = smul.addr %s386, 8
      %s388 = scalar_lea.vmem %s2, %s387
      // Predicated region
      $region29: #{simple_latent_proto.1} parent=27 // pred_check
        %p389 = pneg %p78
      $region30: #{simple_latent_proto.1} parent=27 // pred_check_branch
        %391 = sbr.rel (%p389) target = $region32
      $region31: #{simple_latent_proto.1} parent=27 // pred_region
        _
      $region32: #{simple_latent_proto.1} parent=27 // pred_fallthru
        _
    $region28: #{simple_latent_proto.1} parent=5 // pred_fallthru
      _
    %p392 = scmp.le.s32.totalorder 2, %s8
    // Predicated region
    $region33: #{simple_latent_proto.1} parent=5 // pred_check
      %p393 = pneg %p392
    $region34: #{simple_latent_proto.1} parent=5 // pred_check_branch
      %395 = sbr.rel (%p393) target = $region36
    $region35: #{simple_latent_proto.1} parent=5 // pred_region
      %s396 = ssub.s32 %s8, 2
      // Predicated region
      $region37: #{simple_latent_proto.1} parent=35 // pred_check
        %p397 = pneg %p84
      $region38: #{simple_latent_proto.1} parent=35 // pred_check_branch
        %399 = sbr.rel (%p397) target = $region40
      $region39: #{simple_latent_proto.1} parent=35 // pred_region
        %p400 = scmp.lt.s32.totalorder %s14, 1
        %s401 = scalar_select %p400, %s14, 1
        %s402 = smul.addr %s401, 8
        %s403 = scalar_lea.vmem %s2, %s402
      $region40: #{simple_latent_proto.1} parent=35 // pred_fallthru
        _
    $region36: #{simple_latent_proto.1} parent=5 // pred_fallthru
      _
  $region6: #{simple_latent_proto.1} parent=0 // loop_footer
    %s12 = sadd.s32 1, %s8
  $region7: #{simple_latent_proto.1} parent=0 // loop_footer_branch
    %7 = sbr.rel target = $region3
  $region8: #{simple_latent_proto.1} parent=0 // loop_exit
    _

</llo_original>
